<compile_context>
chip_gen: v7x
topology: tpu7x:2x2x1
jax: 0.10.0
libtpu: 0.0.40
codegen_flags: <defaults>
</compile_context>

<pallas_src>
import numpy as np
import jax
import jax.numpy as jnp
from jax.experimental import pallas as pl
from jax.experimental.pallas import tpu as pltpu

EPS = 1e-6

# ----- packed-constant layout (shared by pack_params and the kernel) ---------
(_CV_LN1W, _CV_LN1B, _CV_GB1, _CV_GB2, _CV_LB2, _CV_CB,
 _CV_LN2W, _CV_LN2B, _CV_BF2, _CV_LB1, _CV_BF1) = range(11)
_CV_COLS = 11
(_M_AVG, _M_GW1, _M_GW2, _M_CW1, _M_CW2, _M_LW2, _M_LW1) = range(7)
_M_COUNT = 7


def _erf(x):
    # Abramowitz & Stegun 7.1.26 (|err| < 1.5e-7); lax.erf is not guaranteed to
    # lower in Mosaic, and this keeps the kernel within f32 accuracy.
    a1, a2, a3, a4, a5 = 0.254829592, -0.284496736, 1.421413741, -1.453152027, 1.061405429
    p = 0.3275911
    sgn = jnp.where(x >= 0.0, 1.0, -1.0)
    ax = jnp.abs(x)
    t = 1.0 / (1.0 + p * ax)
    poly = ((((a5 * t + a4) * t + a3) * t + a2) * t + a1) * t
    return sgn * (1.0 - poly * jnp.exp(-ax * ax))


def _gelu(x):
    # exact (erf-based) GELU, matching torch.nn.GELU()
    return 0.5 * x * (1.0 + _erf(x * 0.7071067811865476))


def interp_matrix(in_size, out_size):
    """Bilinear align_corners=True interpolation matrix (out_size, in_size)."""
    A = np.zeros((out_size, in_size), dtype=np.float32)
    if out_size == 1:
        A[0, 0] = 1.0
        return A
    scale = (in_size - 1) / (out_size - 1)
    for i in range(out_size):
        src = i * scale
        i0 = min(max(int(np.floor(src)), 0), in_size - 1)
        i1 = min(i0 + 1, in_size - 1)
        w1 = np.float32(src - i0)
        A[i, i0] += np.float32(1.0 - w1)
        A[i, i1] += w1
    return A


def tap_masks(H, W):
    """mask[tap, h*W+w] = 1 iff source pixel (h+dh, w+dw) is inside the image.

    tap = (dh+1)*3 + (dw+1), matching the (kh, kw) order of the conv weights.
    The wrap-around lanes produced by a circular roll are always inside the
    masked-off boundary band, so roll + mask == zero-padded shift.
    """
    M = np.zeros((9, H * W), np.float32)
    tap = 0
    for dh in (-1, 0, 1):
        for dw in (-1, 0, 1):
            for h in range(H):
                hh = h + dh
                if not (0 <= hh < H):
                    continue
                for w in range(W):
                    if 0 <= w + dw < W:
                        M[tap, h * W + w] = 1.0
            tap += 1
    return M


def _pick_batch_tile(B, C):
    # Smallest batch tile whose Bt*C rows fill whole 8-sublane vregs.  For
    # larger B this also keeps nblk = B // Bt >= 2 so the "parallel" grid axis
    # can be split across v7x's two TensorCores; with B=2, C=4 full sublanes
    # force a single grid step (override via batch_tile=1 if preferred).
    for bt in range(1, B + 1):
        if B % bt == 0 and (bt * C) % 8 == 0:
            return bt
    return B


_ROLL_NUMPY = None


def _roll_is_numpy_convention():
    """One-time probe: does pltpu.roll move data toward higher lane indices
    (np.roll convention, out[i] = in[i - shift]) or the opposite?"""
    global _ROLL_NUMPY
    if _ROLL_NUMPY is None:
        def k(x_ref, o_ref):
            o_ref[...] = pltpu.roll(x_ref[...], 1, 1)
        x = jnp.arange(8 * 128, dtype=jnp.float32).reshape(8, 128)
        y = pl.pallas_call(
            k, out_shape=jax.ShapeDtypeStruct((8, 128), jnp.float32))(x)
        _ROLL_NUMPY = bool(float(y[0, 1]) == 0.0)   # np.roll puts x[0,0] at [0,1]
    return _ROLL_NUMPY


def pack_params(p, Ah, Aw, Bh, Bw, C, H, W, Ch, K, Bt):
    """Host-side weight preprocessing into the kernel's packed VMEM operands."""
    S = C                               # downsampled spatial size (= C here)
    SS = S * S
    HW = H * W
    BtC, BtCh, BtK = Bt * C, Bt * Ch, Bt * K
    f = lambda a: np.asarray(a, np.float32)
    eye = lambda n: np.eye(n, dtype=np.float32)
    kb = lambda w: np.kron(eye(Bt), f(w))            # block-diag batch replication
    tile = lambda v: np.tile(f(v).reshape(-1), Bt)   # batch-replicated vector

    # --- packed column-vector slab (per-row scales / biases) -----------------
    rows = max(BtK, BtC, 8)
    cv = np.zeros((rows, _CV_COLS), np.float32)
    cv[:BtC, _CV_LN1W] = tile(p['ln1_w']); cv[:BtC, _CV_LN1B] = tile(p['ln1_b'])
    cv[:BtC, _CV_GB1] = tile(p['gb1']);    cv[:BtC, _CV_GB2] = tile(p['gb2'])
    cv[:BtC, _CV_LB2] = tile(p['lb2']);    cv[:BtC, _CV_CB] = tile(p['cb'])
    cv[:BtC, _CV_LN2W] = tile(p['ln2_w']); cv[:BtC, _CV_LN2B] = tile(p['ln2_b'])
    cv[:BtC, _CV_BF2] = tile(p['bf2'])
    cv[:BtCh, _CV_LB1] = tile(p['lb1'])
    cv[:BtK, _CV_BF1] = tile(p['bf1'])

    # --- (BtC, BtC) channel-mix slab (block-diagonal over the batch tile) ----
    mats = np.zeros((_M_COUNT, BtC, BtC), np.float32)
    mats[_M_AVG] = np.kron(eye(Bt), np.full((C, C), 1.0 / C, np.float32))
    mats[_M_GW1] = kb(p['gw1'])
    mats[_M_GW2] = kb(p['gw2'])
    cw = f(p['cw'])
    mats[_M_CW1] = kb(cw[:, :C])                     # acts on y_l
    mats[_M_CW2] = kb(cw[:, C:])                     # acts on y_g
    mats[_M_LW2][:, :BtCh] = kb(p['lw2'])            # (BtC, BtCh), zero-pad cols
    mats[_M_LW1][:BtCh, :] = kb(p['lw1'])            # (BtCh, BtC), zero-pad rows

    # --- Gobal-branch spatial operators (bilinear + permute/conv3 folds) -----
    dmat = np.ascontiguousarray(np.kron(f(Ah), f(Aw)).T)                 # (HW, SS)
    umat = np.ascontiguousarray(np.kron(f(Bh), f(Bw)).T)                 # (SS, HW)
    g3k = np.ascontiguousarray(np.kron(f(p['gw3']), eye(S)).T)           # (SS, SS)
    gb3r = np.repeat(f(p['gb3']), S).reshape(1, SS)

    # --- FC 3x3 conv: per-tap block-diag weights + boundary masks ------------
    w4 = np.transpose(f(p['wf1']), (2, 3, 0, 1)).reshape(9, K, C)        # tap-major
    wf1 = np.stack([np.kron(eye(Bt), w4[t]) for t in range(9)])          # (9, BtK, BtC)
    wf2 = kb(p['wf2'])                                                   # (BtC, BtK)
    masks = tap_masks(H, W)                                              # (9, HW)

    arrs = [cv, mats, dmat, g3k, gb3r, umat, wf1, wf2, masks]
    return [jnp.asarray(a) for a in arrs]


def make_attblock_forward(B, C, H, W, Ch, K, batch_tile=None):
    HW = H * W
    Bt = batch_tile if batch_tile is not None else _pick_batch_tile(B, C)
    assert B % Bt == 0, "batch tile must divide batch"
    nblk = B // Bt
    BtC, BtCh, BtK = Bt * C, Bt * Ch, Bt * K
    inv_hw = 1.0 / HW

    # per-tap roll amounts, adjusted to the probed hardware roll convention
    numpy_conv = _roll_is_numpy_convention()
    shifts = []
    for dh in (-1, 0, 1):
        for dw in (-1, 0, 1):
            d = dh * W + dw
            shifts.append(((-d) % HW) if numpy_conv else (d % HW))

    def kernel(x_ref, cv_ref, mats_ref, dmat_ref, g3k_ref, gb3r_ref, umat_ref,
               wf1_ref, wf2_ref, mask_ref, o_ref):
        f32 = jnp.float32

        cv = cv_ref[...]
        col = lambda i, r: cv[0:r, i:i + 1]
        ln1w, ln1b = col(_CV_LN1W, BtC), col(_CV_LN1B, BtC)
        gb1, gb2 = col(_CV_GB1, BtC), col(_CV_GB2, BtC)
        lb2, cb = col(_CV_LB2, BtC), col(_CV_CB, BtC)
        ln2w, ln2b = col(_CV_LN2W, BtC), col(_CV_LN2B, BtC)
        bf2 = col(_CV_BF2, BtC)
        lb1 = col(_CV_LB1, BtC)          # rows >= Bt*Ch are zero (padded)
        bf1 = col(_CV_BF1, BtK)

        mavg = mats_ref[_M_AVG]
        gw1, gw2 = mats_ref[_M_GW1], mats_ref[_M_GW2]
        cw1, cw2 = mats_ref[_M_CW1], mats_ref[_M_CW2]
        lw2, lw1 = mats_ref[_M_LW2], mats_ref[_M_LW1]
        dmat, umat = dmat_ref[...], umat_ref[...]
        g3k, gb3r = g3k_ref[...], gb3r_ref[...]
        wf2 = wf2_ref[...]
        masks = mask_ref[...]

        def layernorm(v, w, b):
            # per-(batch, pixel) stats over each batch's C channel rows via a
            # block-diagonal averaging matmul (MXU), not serial VPU adds.
            u = jnp.dot(mavg, v, preferred_element_type=f32)
            d = v - u
            s = jnp.dot(mavg, d * d, preferred_element_type=f32)
            return d * jax.lax.rsqrt(s + EPS) * w + b

        xb = x_ref[...]                                              # (BtC, HW)
        yn = layernorm(xb, ln1w, ln1b)

        # ---- Local branch: global-avg-pool squeeze/excite -------------------
        # pooling commutes with the first 1x1 conv -> one well-shaped matmul
        t = jnp.dot(lw1, yn, preferred_element_type=f32)             # (BtC, HW)
        h1 = jnp.maximum(jnp.sum(t, axis=1, keepdims=True) * inv_hw + lb1, 0.0)
        pre = lb2                                                    # (BtC, 1)
        for k in range(BtCh):            # tiny excite: unrolled FMA, no N=1 matmul
            pre = pre + lw2[:, k:k + 1] * h1[k:k + 1, :]
        y_l = yn * jax.nn.sigmoid(pre)

        # ---- Gobal branch: bilinear down, 1x1 convs (permutes folded), up ---
        cube = jnp.dot(yn, dmat, preferred_element_type=f32)                  # (BtC, SS)
        t1 = _gelu(jnp.dot(gw1, cube, preferred_element_type=f32) + gb1)
        t2 = _gelu(jnp.dot(gw2, t1, preferred_element_type=f32) + gb2)
        m = jax.nn.sigmoid(jnp.dot(t2, g3k, preferred_element_type=f32) + gb3r)
        y_g = yn * jnp.dot(m, umat, preferred_element_type=f32)               # (BtC, HW)

        # ---- 1x1 conv on concat([local, gobal]) + residual ------------------
        y1 = (xb + cb
              + jnp.dot(cw1, y_l, preferred_element_type=f32)
              + jnp.dot(cw2, y_g, preferred_element_type=f32))

        # ---- FC: LN2 -> 3x3 conv (XLU roll + mask taps) -> GELU -> 1x1 ------
        yn2 = layernorm(y1, ln2w, ln2b)
        hid = jnp.dot(wf1_ref[4], yn2, preferred_element_type=f32)   # center tap
        for tap in range(9):
            if tap == 4:
                continue
            sh = pltpu.roll(yn2, shifts[tap], 1) * masks[tap:tap + 1, :]
            hid = hid + jnp.dot(wf1_ref[tap], sh, preferred_element_type=f32)
        hid = _gelu(hid + bf1)
        o_ref[...] = y1 + jnp.dot(wf2, hid, preferred_element_type=f32) + bf2

    def _const_spec(shape):
        nd = len(shape)
        return pl.BlockSpec(shape, lambda g: (0,) * nd)

    def forward(x, *weights):
        # lane-dense layout: rows = (batch, channel), lanes = H*W (= 2*128)
        x2 = x.reshape(B * C, HW)
        in_specs = [pl.BlockSpec((BtC, HW), lambda g: (g, 0))]
        in_specs += [_const_spec(w.shape) for w in weights]
        out = pl.pallas_call(
            kernel,
            out_shape=jax.ShapeDtypeStruct((B * C, HW), jnp.float32),
            grid=(nblk,),
            in_specs=in_specs,
            out_specs=pl.BlockSpec((BtC, HW), lambda g: (g, 0)),
            compiler_params=pltpu.CompilerParams(
                dimension_semantics=("parallel",),      # batch tiles independent
                vmem_limit_bytes=32 * 1024 * 1024),     # explicit, v7x-safe
        )(x2, *weights)
        return out.reshape(B, C, H, W)

    return jax.jit(forward)


# ----------------------------- pure-JAX reference -----------------------------
def ref_attblock(x, p, Ah, Aw, Bh, Bw):
    def ln(v, w, b):
        u = v.mean(axis=1, keepdims=True)
        s = ((v - u) ** 2).mean(axis=1, keepdims=True)
        vh = (v - u) / jnp.sqrt(s + EPS)
        return w[None, :, None, None] * vh + b[None, :, None, None]

    def conv1x1(v, w, b):
        return jnp.einsum('oc,bchw->bohw', w, v) + b[None, :, None, None]

    gelu = lambda v: jax.nn.gelu(v, approximate=False)

    y = ln(x, p['ln1_w'], p['ln1_b'])
    # Local
    pool = y.mean(axis=(2, 3), keepdims=True)
    att = jax.nn.sigmoid(conv1x1(jax.nn.relu(conv1x1(pool, p['lw1'], p['lb1'])),
                                 p['lw2'], p['lb2']))
    y_l = y * att
    # Gobal (mirrors the torch code, incl. permutes)
    g = jnp.einsum('ih,jw,bchw->bcij', Ah, Aw, y)
    g = gelu(conv1x1(g, p['gw1'], p['gb1']))
    g = jnp.transpose(g, (0, 1, 3, 2))
    g = gelu(conv1x1(g, p['gw2'], p['gb2']))
    g = jnp.transpose(g, (0, 3, 2, 1))
    g = jax.nn.sigmoid(conv1x1(g, p['gw3'], p['gb3']))
    g = jnp.transpose(g, (0, 3, 1, 2))
    g = jnp.einsum('hi,wj,bcij->bchw', Bh, Bw, g)
    y_g = y * g
    # fuse + residual
    y1 = conv1x1(jnp.concatenate([y_l, y_g], axis=1), p['cw'], p['cb']) + x
    # FC + residual
    y2 = ln(y1, p['ln2_w'], p['ln2_b'])
    h = jax.lax.conv_general_dilated(y2, p['wf1'], (1, 1), ((1, 1), (1, 1)),
                                     dimension_numbers=('NCHW', 'OIHW', 'NCHW'))
    h = gelu(h + p['bf1'][None, :, None, None])
    return conv1x1(h, p['wf2'], p['bf2']) + y1


if __name__ == "__main__":
    B, C, H, W = 2, 4, 16, 16
    ffn_scale = 2.0
    Ch = int(C // ffn_scale)   # Local hidden dim = 2
    K = int(C * ffn_scale)     # FC hidden dim = 8

    key = jax.random.PRNGKey(0)
    keys = jax.random.split(key, 24)
    n = lambda k, shape, s=0.2: s * jax.random.normal(k, shape, dtype=jnp.float32)

    p = {
        'ln1_w': 1.0 + n(keys[0], (C,), 0.1), 'ln1_b': n(keys[1], (C,), 0.1),
        'lw1': n(keys[2], (Ch, C)), 'lb1': n(keys[3], (Ch,), 0.05),
        'lw2': n(keys[4], (C, Ch)), 'lb2': n(keys[5], (C,), 0.05),
        'gw1': n(keys[6], (C, C)), 'gb1': n(keys[7], (C,), 0.05),
        'gw2': n(keys[8], (C, C)), 'gb2': n(keys[9], (C,), 0.05),
        'gw3': n(keys[10], (C, C)), 'gb3': n(keys[11], (C,), 0.05),
        'cw': n(keys[12], (C, 2 * C)), 'cb': n(keys[13], (C,), 0.05),
        'ln2_w': 1.0 + n(keys[14], (C,), 0.1), 'ln2_b': n(keys[15], (C,), 0.1),
        'wf1': n(keys[16], (K, C, 3, 3)), 'bf1': n(keys[17], (K,), 0.05),
        'wf2': n(keys[18], (C, K)), 'bf2': n(keys[19], (C,), 0.05),
    }

    # bilinear align_corners matrices (host-built, exact)
    Ah = interp_matrix(H, C)   # (C, H)
    Aw = interp_matrix(W, C)   # (C, W)
    Bh = interp_matrix(C, H)   # (H, C)
    Bw = interp_matrix(C, W)   # (W, C)

    Bt = _pick_batch_tile(B, C)
    weights = pack_params(p, Ah, Aw, Bh, Bw, C, H, W, Ch, K, Bt)

    x = jax.random.normal(keys[20], (B, C, H, W), dtype=jnp.float32)

    fwd = make_attblock_forward(B, C, H, W, Ch, K, batch_tile=Bt)
    out = jax.block_until_ready(fwd(x, *weights))

    with jax.default_matmul_precision('highest'):
        ref = ref_attblock(x, p, jnp.asarray(Ah), jnp.asarray(Aw),
                           jnp.asarray(Bh), jnp.asarray(Bw))
    max_diff = float(jnp.max(jnp.abs(out - ref)))
    assert out.shape == (B, C, H, W)
    # tight tolerance so a wrong permute/transpose/roll pairing (O(0.1-1)
    # error) cannot slip through.
    assert np.isfinite(max_diff) and max_diff < 5e-4, f"max_diff={max_diff}"
    print("KERNEL_OK")
</pallas_src>

<mosaic_0001>
module attributes {stable_mosaic.version = 11 : i64} {
  func.func @k(%arg0: memref<8x128xf32, #tpu.memory_space<vmem>>, %arg1: memref<8x128xf32, #tpu.memory_space<vmem>>) attributes {dimension_semantics = [], scalar_prefetch = 0 : i64, scratch_operands = 0 : i64, tpu.core_type = #tpu.core_type<tc>} {
    %c0 = arith.constant 0 : index
    %c0_0 = arith.constant 0 : index
    %0 = vector.load %arg0[%c0, %c0_0] : memref<8x128xf32, #tpu.memory_space<vmem>>, vector<8x128xf32>
    %c1_i32 = arith.constant 1 : i32
    %1 = tpu.dynamic_rotate %0 by %c1_i32 dim 1 : vector<8x128xf32>, i32 -> vector<8x128xf32>
    %c0_1 = arith.constant 0 : index
    %c0_2 = arith.constant 0 : index
    %2 = vector.load %arg1[%c0_1, %c0_2] : memref<8x128xf32, #tpu.memory_space<vmem>>, vector<8x128xf32>
    tpu.vector_store %arg1[%c0_1, %c0_2], %1 {strides = array<i32>} : memref<8x128xf32, #tpu.memory_space<vmem>>, vector<8x128xf32>,
    return
  }
}

</mosaic_0001>

<llo_original>
// kernel: tpu_custom_call.1
$region0: #{tpu_custom_call.1}
  #allocation0 [shape = 'u32[]', space=smem, size = 0x4, offset = 0x4, fixed_abs, tag = 'smem constant byte address 0x4 - core index']
  #allocation1 [shape = 'u32[144,128]{1,0:T(1,128)}', space=vmem, size = 0x12000, scoped, tag = 'internal scratch']
  %s0 = inlined_call_operand.hbm [shape: f32[8,128], index: 0, kind: input, shape index: {}]
  %s1 = inlined_call_operand.hbm [shape: f32[8,128], index: 1, kind: output, shape index: {}]
  %s2 = sld [smem:[#allocation0]]
  $region18: #{tpu_custom_call.1} parent=0
    _
  %s4 = ssub.s32 1, %s2
  %s5 = scalar_select 0, %s4, %s2
  $region1: #{tpu_custom_call.1} parent=0
    #allocation2 [shape = 'u8[4096]{0}', space=vmem, size = 0x1000, scoped, tag = 'input window, operand 0, single buffered']
    #allocation3 [shape = 's32[1]{0}', space=sflag, size = 0x4, scoped, tag = 'scoped memory for tpu_custom_call.1']
    #allocation4 [shape = 's32[1]{0}', space=sflag, size = 0x4, scoped, tag = 'scoped memory for tpu_custom_call.1']
    #allocation5 [shape = 'u8[4096]{0}', space=vmem, size = 0x1000, scoped, tag = 'output window, operand 0, single buffered']
    %6 = vsyncpa [#allocation3], 0
    %7 = vsyncpa [#allocation4], 0
    // Predicated region
    $region2: #{tpu_custom_call.1} parent=1 // pred_check
      _
    $region3: #{tpu_custom_call.1} parent=1 // pred_check_branch
      %9 = sbr.rel (0) target = $region5
    $region4: #{tpu_custom_call.1} parent=1 // pred_region
      %s11 = ssub.s32 128, 128
      %12 = vsyncadd [#allocation3], %s11
      %s14 = sshll.u32 [#allocation2], 4
      %s15 = int_to_ptr.vmem [resolvable:$true] %s14
      %17 = dma.hbm_to_vmem [thread:$0]  %s0, 128, %s15, [#allocation3]
    $region5: #{tpu_custom_call.1} parent=1 // pred_fallthru
      _
    // Predicated region
    $region6: #{tpu_custom_call.1} parent=1 // pred_check
      _
    $region7: #{tpu_custom_call.1} parent=1 // pred_check_branch
      %19 = sbr.rel (0) target = $region9
    $region8: #{tpu_custom_call.1} parent=1 // pred_region
      %20 = dma.done [#allocation3], 128
    $region9: #{tpu_custom_call.1} parent=1 // pred_fallthru
      _
    %v21 = vld [vmem:[#allocation2] sm:$0xff]
    %22 = vrot.lane.b32.xlu0 %v21, 1
    %v23 = vpop.permute.xlu0 %22
    %24 = vst [vmem:[#allocation5] sm:$0xff] %v23
    // Predicated region
    $region10: #{tpu_custom_call.1} parent=1 // pred_check
      _
    $region11: #{tpu_custom_call.1} parent=1 // pred_check_branch
      %26 = sbr.rel (0) target = $region13
    $region12: #{tpu_custom_call.1} parent=1 // pred_region
      %s28 = ssub.s32 128, 128
      %29 = vsyncadd [#allocation4], %s28
      %s31 = sshll.u32 [#allocation5], 4
      %s32 = int_to_ptr.vmem [resolvable:$true] %s31
      %34 = dma.vmem_to_hbm [thread:$0]  %s32, 128, %s1, [#allocation4]
    $region13: #{tpu_custom_call.1} parent=1 // pred_fallthru
      _
    // Predicated region
    $region14: #{tpu_custom_call.1} parent=1 // pred_check
      _
    $region15: #{tpu_custom_call.1} parent=1 // pred_check_branch
      %36 = sbr.rel (0) target = $region17
    $region16: #{tpu_custom_call.1} parent=1 // pred_region
      %37 = dma.done [#allocation4], 128
    $region17: #{tpu_custom_call.1} parent=1 // pred_fallthru
      _
    %38 = vsyncpa [#allocation3], 1
    %39 = vsyncpa [#allocation4], 1

</llo_original>
